<compile_context>
chip_gen: v7x
topology: tpu7x:2x2x1
jax: 0.10.0
libtpu: 0.0.40
codegen_flags: <defaults>
</compile_context>

<pallas_src>
import functools

import jax
import jax.numpy as jnp
from jax.experimental import pallas as pl
from jax.experimental.pallas import tpu as pltpu


def _round_up(x, m):
    return ((x + m - 1) // m) * m


def _default_bf16_activations():
    """Use bf16 bias-add / tanh only on chips with a bf16 VPU/EUP (v6e, v7x)."""
    try:
        kind = jax.devices()[0].device_kind.lower()
    except Exception:
        return False
    return ("v6" in kind) or ("v7" in kind) or ("7x" in kind)


def _choose_tile(B, target):
    """Pick the batch-tile size.

    * target is rounded up to a multiple of 8 (sublane constraint).
    * If the whole batch fits in one target tile:
        - small batches (<=256 rows): one full-extent block (always legal, no pad);
        - larger batches: split into 2 tiles so the "parallel" grid axis can
          shard across both TensorCores on v7x.
    * Otherwise use the target tile; grid = cdiv(B, tile) with a ragged last
      block (tile is a multiple of 8, so the block layout stays legal).
    """
    target = max(8, _round_up(int(target), 8))
    if target >= B:
        if B > 256:
            return _round_up(pl.cdiv(B, 2), 8)
        return B
    return target


def mlp_kernel(x_ref, w1_ref, b1_ref, w2_ref, b2_ref,
               w3_ref, b3_ref, w4_ref, b4_ref, o_ref):
    """One batch tile of the 4-layer MLP, entirely in VMEM.

    * x arrives as f32; the MXU-operand cast happens here (hidden under the MXU).
    * MXU operand dtype = w*_ref.dtype (bf16 by default); accumulation is f32.
    * bias-add / tanh dtype = b1_ref.dtype (bf16 on v6e/v7x, f32 on v5e-).
    * Final layer: f32 bias add, f32 store.
    """
    mxu_dt = w1_ref.dtype
    act_dt = b1_ref.dtype

    h = x_ref[...].astype(mxu_dt)
    h = jnp.dot(h, w1_ref[...], preferred_element_type=jnp.float32)
    h = jnp.tanh(h.astype(act_dt) + b1_ref[...]).astype(mxu_dt)

    h = jnp.dot(h, w2_ref[...], preferred_element_type=jnp.float32)
    h = jnp.tanh(h.astype(act_dt) + b2_ref[...]).astype(mxu_dt)

    h = jnp.dot(h, w3_ref[...], preferred_element_type=jnp.float32)
    h = jnp.tanh(h.astype(act_dt) + b3_ref[...]).astype(mxu_dt)

    out = jnp.dot(h, w4_ref[...], preferred_element_type=jnp.float32) + b4_ref[...]
    o_ref[...] = out.astype(o_ref.dtype)


@functools.partial(jax.jit, static_argnames=("tile_b", "use_bf16", "bf16_activations"))
def _neural_net_forward(x, params, tile_b, use_bf16, bf16_activations):
    B, in_size = x.shape
    out_size = params[-1][0].shape[1]
    n_layers = len(params)

    mxu_dtype = jnp.bfloat16 if use_bf16 else jnp.float32
    act_dtype = jnp.bfloat16 if (use_bf16 and bf16_activations) else jnp.float32

    tile = _choose_tile(B, tile_b)
    grid = (pl.cdiv(B, tile),)

    flat_args = [x]                                    # f32; cast happens in-kernel
    in_specs = [pl.BlockSpec((tile, in_size), lambda i: (i, 0))]
    for li, (w, b) in enumerate(params):
        b_dt = jnp.float32 if li == n_layers - 1 else act_dtype
        flat_args.append(w.astype(mxu_dtype))          # tiny; cast once, outside kernel
        flat_args.append(b.astype(b_dt))
        # Constant index_map -> stays VMEM-resident, no re-DMA per batch tile.
        in_specs.append(pl.BlockSpec(w.shape, lambda i: (0, 0)))
        in_specs.append(pl.BlockSpec(b.shape, lambda i: (0, 0)))

    # Advisory cost hint for the XLA scheduler (no wrapper-side pad/cast passes now).
    w_item = jnp.dtype(mxu_dtype).itemsize
    flops = 2 * B * sum(int(w.shape[0]) * int(w.shape[1]) for w, _ in params)
    transcendentals = B * sum(int(w.shape[1]) for w, _ in params[:-1])
    bytes_accessed = (x.size * jnp.dtype(x.dtype).itemsize
                      + B * out_size * 4
                      + sum(w.size * w_item + b.size * 4 for w, b in params))

    return pl.pallas_call(
        mlp_kernel,
        out_shape=jax.ShapeDtypeStruct((B, out_size), jnp.float32),
        grid=grid,
        in_specs=in_specs,
        out_specs=pl.BlockSpec((tile, out_size), lambda i: (i, 0)),
        compiler_params=pltpu.CompilerParams(
            dimension_semantics=("parallel",),          # shards across TCs on v7x
            vmem_limit_bytes=32 * 1024 * 1024,          # headroom for big tiles (v5e)
        ),
        cost_estimate=pl.CostEstimate(flops=flops,
                                      transcendentals=transcendentals,
                                      bytes_accessed=bytes_accessed),
    )(*flat_args)


def neural_net_forward(x, params, *, tile_b=2048, use_bf16=True, bf16_activations=None):
    """x: (B, input_size) f32; params: list of 4 (W, b) with W (in, out), b (1, out)."""
    if bf16_activations is None:
        bf16_activations = bool(use_bf16) and _default_bf16_activations()
    params = tuple((w, b) for w, b in params)
    return _neural_net_forward(x, params, tile_b=int(tile_b),
                               use_bf16=bool(use_bf16),
                               bf16_activations=bool(bf16_activations))


def init_params(key, input_size, output_size, layers=(128, 128, 128)):
    """Deterministic init matching the PyTorch module:
    xavier-normal weights, uniform(-1/sqrt(fan_in), 1/sqrt(fan_in)) biases."""
    dims = [input_size, *layers, output_size]
    params = []
    for i in range(len(dims) - 1):
        fan_in, fan_out = dims[i], dims[i + 1]
        key, kw, kb = jax.random.split(key, 3)
        std = jnp.sqrt(2.0 / (fan_in + fan_out))          # xavier normal, gain=1
        w = std * jax.random.normal(kw, (fan_in, fan_out), dtype=jnp.float32)
        bound = 1.0 / jnp.sqrt(fan_in)                    # default Linear bias init
        b = jax.random.uniform(kb, (1, fan_out), dtype=jnp.float32,
                               minval=-bound, maxval=bound)
        params.append((w, b))
    return params


def reference_forward(x, params, mxu_dtype=jnp.float32, act_dtype=jnp.float32):
    """Pure-JAX reference with the same cast pattern as the kernel."""
    h = x.astype(mxu_dtype)
    n = len(params)
    y = h
    for i, (w, b) in enumerate(params):
        y = jnp.dot(h, w.astype(mxu_dtype), preferred_element_type=jnp.float32)
        if i < n - 1:
            h = jnp.tanh(y.astype(act_dtype) + b.astype(act_dtype)).astype(mxu_dtype)
        else:
            y = y + b.astype(jnp.float32)
    return y.astype(jnp.float32)


if __name__ == "__main__":
    key = jax.random.PRNGKey(0)
    batch, input_size, output_size = 8, 32, 8

    key, kx = jax.random.split(key)
    x = jax.random.normal(kx, (batch, input_size), dtype=jnp.float32)
    params = init_params(key, input_size, output_size)

    bf16_act = _default_bf16_activations()
    act_dt = jnp.bfloat16 if bf16_act else jnp.float32

    # Small batch: single full-extent block, grid of 1.
    out = jax.block_until_ready(neural_net_forward(x, params))
    ref_matched = reference_forward(x, params, mxu_dtype=jnp.bfloat16, act_dtype=act_dt)
    ref_f32 = reference_forward(x, params)
    assert out.shape == (batch, output_size)
    assert jnp.allclose(out, ref_matched, atol=1e-2, rtol=1e-2), \
        "mismatch vs matched-precision reference"
    assert jnp.allclose(out, ref_f32, atol=1e-1, rtol=1e-1), "mismatch vs f32 reference"

    # Larger batch with a non-dividing explicit tile: multi-step grid + ragged
    # last block (no jnp.pad copy is ever materialized).
    key, kx2 = jax.random.split(key)
    x2 = jax.random.normal(kx2, (200, input_size), dtype=jnp.float32)
    out2 = jax.block_until_ready(neural_net_forward(x2, params, tile_b=64))
    ref2 = reference_forward(x2, params, mxu_dtype=jnp.bfloat16, act_dtype=act_dt)
    assert out2.shape == (200, output_size)
    assert jnp.allclose(out2, ref2, atol=1e-2, rtol=1e-2), "mismatch (gridded / ragged batch)"

    # Same data through the default large-tile path (single full-extent block).
    out3 = jax.block_until_ready(neural_net_forward(x2, params))
    assert jnp.allclose(out3, ref2, atol=1e-2, rtol=1e-2), "mismatch (default tile)"

    print("KERNEL_OK")
</pallas_src>

<mosaic_0001>
module attributes {stable_mosaic.version = 11 : i64} {
  func.func @mlp_kernel(%arg0: i32, %arg1: memref<8x32xf32, #tpu.memory_space<vmem>>, %arg2: memref<32x128xbf16, #tpu.memory_space<vmem>>, %arg3: memref<1x128xf32, #tpu.memory_space<vmem>>, %arg4: memref<128x128xbf16, #tpu.memory_space<vmem>>, %arg5: memref<1x128xf32, #tpu.memory_space<vmem>>, %arg6: memref<128x128xbf16, #tpu.memory_space<vmem>>, %arg7: memref<1x128xf32, #tpu.memory_space<vmem>>, %arg8: memref<128x8xbf16, #tpu.memory_space<vmem>>, %arg9: memref<1x8xf32, #tpu.memory_space<vmem>>, %arg10: memref<8x8xf32, #tpu.memory_space<vmem>>) attributes {dimension_semantics = [#tpu.dimension_semantics<parallel>], iteration_bounds = array<i64: 1>, scalar_prefetch = 0 : i64, scratch_operands = 0 : i64, tpu.core_type = #tpu.core_type<tc>, window_params = [{transform_indices = @transform_0, window_bounds = array<i64: 8, 32>}, {pipeline_mode = #tpu.pipeline_mode<synchronous>, transform_indices = @transform_1, window_bounds = array<i64: 32, 128>}, {pipeline_mode = #tpu.pipeline_mode<synchronous>, transform_indices = @transform_2, window_bounds = array<i64: 1, 128>}, {pipeline_mode = #tpu.pipeline_mode<synchronous>, transform_indices = @transform_3, window_bounds = array<i64: 128, 128>}, {pipeline_mode = #tpu.pipeline_mode<synchronous>, transform_indices = @transform_4, window_bounds = array<i64: 1, 128>}, {pipeline_mode = #tpu.pipeline_mode<synchronous>, transform_indices = @transform_5, window_bounds = array<i64: 128, 128>}, {pipeline_mode = #tpu.pipeline_mode<synchronous>, transform_indices = @transform_6, window_bounds = array<i64: 1, 128>}, {pipeline_mode = #tpu.pipeline_mode<synchronous>, transform_indices = @transform_7, window_bounds = array<i64: 128, 8>}, {pipeline_mode = #tpu.pipeline_mode<synchronous>, transform_indices = @transform_8, window_bounds = array<i64: 1, 8>}, {transform_indices = @transform_9, window_bounds = array<i64: 8, 8>}]} {
    %c0 = arith.constant 0 : index
    %c0_0 = arith.constant 0 : index
    %0 = vector.load %arg1[%c0, %c0_0] : memref<8x32xf32, #tpu.memory_space<vmem>>, vector<8x32xf32>
    %1 = arith.truncf %0 : vector<8x32xf32> to vector<8x32xbf16>
    %c0_1 = arith.constant 0 : index
    %c0_2 = arith.constant 0 : index
    %2 = vector.load %arg2[%c0_1, %c0_2] : memref<32x128xbf16, #tpu.memory_space<vmem>>, vector<32x128xbf16>
    %cst = arith.constant dense<0.000000e+00> : vector<8x128xf32>
    %3 = tpu.matmul %1, %2, %cst {dimension_numbers = #tpu.dot_dimension_numbers<[1], [0], [0], [1], [0, 0, 1, 1], [], []>} : vector<8x32xbf16>, vector<32x128xbf16>, vector<8x128xf32> -> vector<8x128xf32>
    %c0_3 = arith.constant 0 : index
    %c0_4 = arith.constant 0 : index
    %4 = vector.load %arg3[%c0_3, %c0_4] : memref<1x128xf32, #tpu.memory_space<vmem>>, vector<1x128xf32>
    %5 = vector.broadcast %4 : vector<1x128xf32> to vector<8x128xf32>
    %6 = arith.addf %3, %5 : vector<8x128xf32>
    %7 = math.tanh %6 : vector<8x128xf32>
    %8 = arith.truncf %7 : vector<8x128xf32> to vector<8x128xbf16>
    %c0_5 = arith.constant 0 : index
    %c0_6 = arith.constant 0 : index
    %9 = vector.load %arg4[%c0_5, %c0_6] : memref<128x128xbf16, #tpu.memory_space<vmem>>, vector<128x128xbf16>
    %cst_7 = arith.constant dense<0.000000e+00> : vector<8x128xf32>
    %10 = tpu.matmul %8, %9, %cst_7 {dimension_numbers = #tpu.dot_dimension_numbers<[1], [0], [0], [1], [0, 0, 1, 1], [], []>} : vector<8x128xbf16>, vector<128x128xbf16>, vector<8x128xf32> -> vector<8x128xf32>
    %c0_8 = arith.constant 0 : index
    %c0_9 = arith.constant 0 : index
    %11 = vector.load %arg5[%c0_8, %c0_9] : memref<1x128xf32, #tpu.memory_space<vmem>>, vector<1x128xf32>
    %12 = vector.broadcast %11 : vector<1x128xf32> to vector<8x128xf32>
    %13 = arith.addf %10, %12 : vector<8x128xf32>
    %14 = math.tanh %13 : vector<8x128xf32>
    %15 = arith.truncf %14 : vector<8x128xf32> to vector<8x128xbf16>
    %c0_10 = arith.constant 0 : index
    %c0_11 = arith.constant 0 : index
    %16 = vector.load %arg6[%c0_10, %c0_11] : memref<128x128xbf16, #tpu.memory_space<vmem>>, vector<128x128xbf16>
    %cst_12 = arith.constant dense<0.000000e+00> : vector<8x128xf32>
    %17 = tpu.matmul %15, %16, %cst_12 {dimension_numbers = #tpu.dot_dimension_numbers<[1], [0], [0], [1], [0, 0, 1, 1], [], []>} : vector<8x128xbf16>, vector<128x128xbf16>, vector<8x128xf32> -> vector<8x128xf32>
    %c0_13 = arith.constant 0 : index
    %c0_14 = arith.constant 0 : index
    %18 = vector.load %arg7[%c0_13, %c0_14] : memref<1x128xf32, #tpu.memory_space<vmem>>, vector<1x128xf32>
    %19 = vector.broadcast %18 : vector<1x128xf32> to vector<8x128xf32>
    %20 = arith.addf %17, %19 : vector<8x128xf32>
    %21 = math.tanh %20 : vector<8x128xf32>
    %22 = arith.truncf %21 : vector<8x128xf32> to vector<8x128xbf16>
    %c0_15 = arith.constant 0 : index
    %c0_16 = arith.constant 0 : index
    %23 = vector.load %arg8[%c0_15, %c0_16] : memref<128x8xbf16, #tpu.memory_space<vmem>>, vector<128x8xbf16>
    %cst_17 = arith.constant dense<0.000000e+00> : vector<8x8xf32>
    %24 = tpu.matmul %22, %23, %cst_17 {dimension_numbers = #tpu.dot_dimension_numbers<[1], [0], [0], [1], [0, 0, 1, 1], [], []>} : vector<8x128xbf16>, vector<128x8xbf16>, vector<8x8xf32> -> vector<8x8xf32>
    %c0_18 = arith.constant 0 : index
    %c0_19 = arith.constant 0 : index
    %25 = vector.load %arg9[%c0_18, %c0_19] : memref<1x8xf32, #tpu.memory_space<vmem>>, vector<1x8xf32>
    %26 = vector.broadcast %25 : vector<1x8xf32> to vector<8x8xf32>
    %27 = arith.addf %24, %26 : vector<8x8xf32>
    %c0_20 = arith.constant 0 : index
    %c0_21 = arith.constant 0 : index
    %28 = vector.load %arg10[%c0_20, %c0_21] : memref<8x8xf32, #tpu.memory_space<vmem>>, vector<8x8xf32>
    tpu.vector_store %arg10[%c0_20, %c0_21], %27 {strides = array<i32>} : memref<8x8xf32, #tpu.memory_space<vmem>>, vector<8x8xf32>,
    return
  }
  func.func @transform_0(%arg0: i32) -> (i32, i32) {
    %c0_i32 = arith.constant 0 : i32
    %c0_i32_0 = arith.constant 0 : i32
    return %arg0, %c0_i32 : i32, i32
  }
  func.func @transform_1(%arg0: i32) -> (i32, i32) {
    %c0_i32 = arith.constant 0 : i32
    %c0_i32_0 = arith.constant 0 : i32
    %c0_i32_1 = arith.constant 0 : i32
    return %c0_i32, %c0_i32_0 : i32, i32
  }
  func.func @transform_2(%arg0: i32) -> (i32, i32) {
    %c0_i32 = arith.constant 0 : i32
    %c0_i32_0 = arith.constant 0 : i32
    %c0_i32_1 = arith.constant 0 : i32
    return %c0_i32, %c0_i32_0 : i32, i32
  }
  func.func @transform_3(%arg0: i32) -> (i32, i32) {
    %c0_i32 = arith.constant 0 : i32
    %c0_i32_0 = arith.constant 0 : i32
    %c0_i32_1 = arith.constant 0 : i32
    return %c0_i32, %c0_i32_0 : i32, i32
  }
  func.func @transform_4(%arg0: i32) -> (i32, i32) {
    %c0_i32 = arith.constant 0 : i32
    %c0_i32_0 = arith.constant 0 : i32
    %c0_i32_1 = arith.constant 0 : i32
    return %c0_i32, %c0_i32_0 : i32, i32
  }
  func.func @transform_5(%arg0: i32) -> (i32, i32) {
    %c0_i32 = arith.constant 0 : i32
    %c0_i32_0 = arith.constant 0 : i32
    %c0_i32_1 = arith.constant 0 : i32
    return %c0_i32, %c0_i32_0 : i32, i32
  }
  func.func @transform_6(%arg0: i32) -> (i32, i32) {
    %c0_i32 = arith.constant 0 : i32
    %c0_i32_0 = arith.constant 0 : i32
    %c0_i32_1 = arith.constant 0 : i32
    return %c0_i32, %c0_i32_0 : i32, i32
  }
  func.func @transform_7(%arg0: i32) -> (i32, i32) {
    %c0_i32 = arith.constant 0 : i32
    %c0_i32_0 = arith.constant 0 : i32
    %c0_i32_1 = arith.constant 0 : i32
    return %c0_i32, %c0_i32_0 : i32, i32
  }
  func.func @transform_8(%arg0: i32) -> (i32, i32) {
    %c0_i32 = arith.constant 0 : i32
    %c0_i32_0 = arith.constant 0 : i32
    %c0_i32_1 = arith.constant 0 : i32
    return %c0_i32, %c0_i32_0 : i32, i32
  }
  func.func @transform_9(%arg0: i32) -> (i32, i32) {
    %c0_i32 = arith.constant 0 : i32
    %c0_i32_0 = arith.constant 0 : i32
    return %arg0, %c0_i32 : i32, i32
  }
}

</mosaic_0001>

<llo_original>
// kernel: _neural_net_forward.1
$region0: #{_neural_net_forward.1}
  #allocation0 [shape = 'u32[]', space=smem, size = 0x4, offset = 0x4, fixed_abs, tag = 'smem constant byte address 0x4 - core index']
  #allocation1 [shape = 'u32[144,128]{1,0:T(1,128)}', space=vmem, size = 0x12000, scoped, tag = 'internal scratch']
  %s0 = inlined_call_operand.vmem [shape: f32[8,32], index: 0, kind: input, shape index: {}]
  %s1 = inlined_call_operand.vmem [shape: bf16[32,128], index: 1, kind: input, shape index: {}]
  %s2 = inlined_call_operand.vmem [shape: f32[1,128], index: 2, kind: input, shape index: {}]
  %s3 = inlined_call_operand.vmem [shape: bf16[128,128], index: 3, kind: input, shape index: {}]
  %s4 = inlined_call_operand.vmem [shape: f32[1,128], index: 4, kind: input, shape index: {}]
  %s5 = inlined_call_operand.vmem [shape: bf16[128,128], index: 5, kind: input, shape index: {}]
  %s6 = inlined_call_operand.vmem [shape: f32[1,128], index: 6, kind: input, shape index: {}]
  %s7 = inlined_call_operand.vmem [shape: bf16[128,8], index: 7, kind: input, shape index: {}]
  %s8 = inlined_call_operand.vmem [shape: f32[1,8], index: 8, kind: input, shape index: {}]
  %s9 = inlined_call_operand.hbm [shape: f32[8,8], index: 9, kind: output, shape index: {}]
  %s10 = sld [smem:[#allocation0]]
  $region46: #{_neural_net_forward.1} parent=0
    _
  %s12 = ssub.s32 1, %s10
  %s13 = scalar_select 0, %s12, %s10
  $region1: #{_neural_net_forward.1} parent=0
    #allocation2 [shape = 'u8[4096]{0}', space=vmem, size = 0x1000, scoped, tag = 'output window, operand 0, single buffered']
    #allocation3 [shape = 's32[1]{0}', space=sflag, size = 0x4, scoped, tag = 'scoped memory for _neural_net_forward.1']
    %14 = vsyncpa [#allocation3], 0
    // Predicated region
    $region2: #{_neural_net_forward.1} parent=1 // pred_check
      _
    $region3: #{_neural_net_forward.1} parent=1 // pred_check_branch
      %16 = sbr.rel (0) target = $region5
    $region4: #{_neural_net_forward.1} parent=1 // pred_region
      _
    $region5: #{_neural_net_forward.1} parent=1 // pred_fallthru
      _
    // Predicated region
    $region6: #{_neural_net_forward.1} parent=1 // pred_check
      _
    $region7: #{_neural_net_forward.1} parent=1 // pred_check_branch
      %18 = sbr.rel (0) target = $region9
    $region8: #{_neural_net_forward.1} parent=1 // pred_region
      _
    $region9: #{_neural_net_forward.1} parent=1 // pred_fallthru
      _
    // Predicated region
    $region10: #{_neural_net_forward.1} parent=1 // pred_check
      _
    $region11: #{_neural_net_forward.1} parent=1 // pred_check_branch
      %20 = sbr.rel (0) target = $region13
    $region12: #{_neural_net_forward.1} parent=1 // pred_region
      _
    $region13: #{_neural_net_forward.1} parent=1 // pred_fallthru
      _
    // Predicated region
    $region14: #{_neural_net_forward.1} parent=1 // pred_check
      _
    $region15: #{_neural_net_forward.1} parent=1 // pred_check_branch
      %22 = sbr.rel (0) target = $region17
    $region16: #{_neural_net_forward.1} parent=1 // pred_region
      _
    $region17: #{_neural_net_forward.1} parent=1 // pred_fallthru
      _
    // Predicated region
    $region18: #{_neural_net_forward.1} parent=1 // pred_check
      _
    $region19: #{_neural_net_forward.1} parent=1 // pred_check_branch
      %24 = sbr.rel (0) target = $region21
    $region20: #{_neural_net_forward.1} parent=1 // pred_region
      _
    $region21: #{_neural_net_forward.1} parent=1 // pred_fallthru
      _
    // Predicated region
    $region22: #{_neural_net_forward.1} parent=1 // pred_check
      _
    $region23: #{_neural_net_forward.1} parent=1 // pred_check_branch
      %26 = sbr.rel (0) target = $region25
    $region24: #{_neural_net_forward.1} parent=1 // pred_region
      _
    $region25: #{_neural_net_forward.1} parent=1 // pred_fallthru
      _
    // Predicated region
    $region26: #{_neural_net_forward.1} parent=1 // pred_check
      _
    $region27: #{_neural_net_forward.1} parent=1 // pred_check_branch
      %28 = sbr.rel (0) target = $region29
    $region28: #{_neural_net_forward.1} parent=1 // pred_region
      _
    $region29: #{_neural_net_forward.1} parent=1 // pred_fallthru
      _
    // Predicated region
    $region30: #{_neural_net_forward.1} parent=1 // pred_check
      _
    $region31: #{_neural_net_forward.1} parent=1 // pred_check_branch
      %30 = sbr.rel (0) target = $region33
    $region32: #{_neural_net_forward.1} parent=1 // pred_region
      _
    $region33: #{_neural_net_forward.1} parent=1 // pred_fallthru
      _
    // Predicated region
    $region34: #{_neural_net_forward.1} parent=1 // pred_check
      _
    $region35: #{_neural_net_forward.1} parent=1 // pred_check_branch
      %32 = sbr.rel (0) target = $region37
    $region36: #{_neural_net_forward.1} parent=1 // pred_region
      _
    $region37: #{_neural_net_forward.1} parent=1 // pred_fallthru
      _
    %v34 = vld [vmem:[%s0] sm:$0xff]
    %v35 = vpack.c.bf16 %v34, %v34
    %v36 = vld [vmem:[%s1] sm:$0xf]
    %v37 = vld [vmem:[%s1 + $0x4] sm:$0xf]
    %v38 = vld [vmem:[%s1 + $0x8] sm:$0xf]
    %v39 = vld [vmem:[%s1 + $0xc] sm:$0xf]
    %v40 = vld [vmem:[%s2] sm:$0x1]
    %v42 = vlaneseq
    %v43 = vshrl.u32 %v42, 7
    %v44 = vsub.s32 0, %v43
    %v45 = vrot.slane %v40, %v44
    %v51 = vunpack.c.l.b16 %v36
    %v52 = vunpack.c.l.b16 %v37
    %v53 = vunpack.c.l.b16 %v38
    %v54 = vunpack.c.l.b16 %v39
    %v55 = vpack.c.b16 %v52, %v51
    %v56 = vpack.c.b16 %v54, %v53
    %vm59 = vcmask 261120
    %v61 = vsel %vm59, %v35, 0
    %63 = vmatprep.subr.bf16.mxu0 0
    %64 = vmatpush1.bf16.msra.mxu0 %v55
    %65 = vmatprep.subr.bf16.mxu0 0
    %66 = vmatpush1.bf16.msra.mxu0 %v56
    %67 = vmatprep.subr.bf16.mxu0 0
    %68 = vmatpush1.bf16.msra.mxu0 0
    %69 = vmatprep.subr.bf16.mxu0 0
    %70 = vmatpush1.bf16.msra.mxu0 0
    %71 = vmatprep.subr.bf16.mxu0 0
    %72 = vmatpush1.bf16.msra.mxu0 0
    %73 = vmatprep.subr.bf16.mxu0 0
    %74 = vmatpush1.bf16.msra.mxu0 0
    %75 = vmatprep.subr.bf16.mxu0 0
    %76 = vmatpush1.bf16.msra.mxu0 0
    %77 = vmatprep.subr.bf16.mxu0 0
    %78 = vmatpush1.bf16.msra.mxu0 0
    %79 = vmatprep.subr.bf16.mxu0 0
    %80 = vmatpush1.bf16.msra.mxu0 0
    %81 = vmatprep.subr.bf16.mxu0 0
    %82 = vmatpush1.bf16.msra.mxu0 0
    %83 = vmatprep.subr.bf16.mxu0 0
    %84 = vmatpush1.bf16.msra.mxu0 0
    %85 = vmatprep.subr.bf16.mxu0 0
    %86 = vmatpush1.bf16.msra.mxu0 0
    %87 = vmatprep.subr.bf16.mxu0 0
    %88 = vmatpush1.bf16.msra.mxu0 0
    %89 = vmatprep.subr.bf16.mxu0 0
    %90 = vmatpush1.bf16.msra.mxu0 0
    %91 = vmatprep.subr.bf16.mxu0 0
    %92 = vmatpush1.bf16.msra.mxu0 0
    %93 = vmatprep.subr.bf16.mxu0 0
    %94 = vmatpush1.bf16.msra.mxu0 0
    %95 = vmatprep.mubr.bf16.mxu0 0
    %96 = vmatmul.mubr.bf16.gmra.mrb[0].mxu0 %v61
    %v97 = vpop.f32.mrb[0].mxu0
    %v98 = vadd.f32 %v45, %v97
    %v99 = vpop.f32.mrb[0].mxu0
    %v100 = vpop.f32.mrb[0].mxu0
    %v101 = vpop.f32.mrb[0].mxu0
    %102 = vdwg.mxu0
    %v103 = vtanh.pop %v98
    %v104 = vpack.c.bf16 %v103, %v103
    %v105 = vld [vmem:[%s3] sm:$0xf]
    %v106 = vld [vmem:[%s3 + $0x4] sm:$0xf]
    %v107 = vld [vmem:[%s3 + $0x8] sm:$0xf]
    %v108 = vld [vmem:[%s3 + $0xc] sm:$0xf]
    %v109 = vld [vmem:[%s3 + $0x10] sm:$0xf]
    %v110 = vld [vmem:[%s3 + $0x14] sm:$0xf]
    %v111 = vld [vmem:[%s3 + $0x18] sm:$0xf]
    %v112 = vld [vmem:[%s3 + $0x1c] sm:$0xf]
    %v113 = vld [vmem:[%s3 + $0x20] sm:$0xf]
    %v114 = vld [vmem:[%s3 + $0x24] sm:$0xf]
    %v115 = vld [vmem:[%s3 + $0x28] sm:$0xf]
    %v116 = vld [vmem:[%s3 + $0x2c] sm:$0xf]
    %v117 = vld [vmem:[%s3 + $0x30] sm:$0xf]
    %v118 = vld [vmem:[%s3 + $0x34] sm:$0xf]
    %v119 = vld [vmem:[%s3 + $0x38] sm:$0xf]
    %v120 = vld [vmem:[%s3 + $0x3c] sm:$0xf]
    %v121 = vld [vmem:[%s4] sm:$0x1]
    %v123 = vlaneseq
    %v124 = vshrl.u32 %v123, 7
    %v125 = vsub.s32 0, %v124
    %v126 = vrot.slane %v121, %v125
    %v144 = vunpack.c.l.b16 %v105
    %v145 = vunpack.c.l.b16 %v106
    %v146 = vunpack.c.l.b16 %v107
    %v147 = vunpack.c.l.b16 %v108
    %v148 = vunpack.c.l.b16 %v109
    %v149 = vunpack.c.l.b16 %v110
    %v150 = vunpack.c.l.b16 %v111
    %v151 = vunpack.c.l.b16 %v112
    %v152 = vunpack.c.l.b16 %v113
    %v153 = vunpack.c.l.b16 %v114
    %v154 = vunpack.c.l.b16 %v115
    %v155 = vunpack.c.l.b16 %v116
    %v156 = vunpack.c.l.b16 %v117
    %v157 = vunpack.c.l.b16 %v118
    %v158 = vunpack.c.l.b16 %v119
    %v159 = vunpack.c.l.b16 %v120
    %v160 = vpack.c.b16 %v145, %v144
    %v161 = vpack.c.b16 %v147, %v146
    %v162 = vpack.c.b16 %v149, %v148
    %v163 = vpack.c.b16 %v151, %v150
    %v164 = vpack.c.b16 %v153, %v152
    %v165 = vpack.c.b16 %v155, %v154
    %v166 = vpack.c.b16 %v157, %v156
    %v167 = vpack.c.b16 %v159, %v158
    %176 = vmatprep.subr.bf16.mxu0 0
    %177 = vmatpush1.bf16.msra.mxu0 %v160
    %178 = vmatprep.subr.bf16.mxu0 0
    %179 = vmatpush1.bf16.msra.mxu0 %v161
    %180 = vmatprep.subr.bf16.mxu0 0
    %181 = vmatpush1.bf16.msra.mxu0 %v162
    %182 = vmatprep.subr.bf16.mxu0 0
    %183 = vmatpush1.bf16.msra.mxu0 %v163
    %184 = vmatprep.subr.bf16.mxu0 0
    %185 = vmatpush1.bf16.msra.mxu0 %v164
    %186 = vmatprep.subr.bf16.mxu0 0
    %187 = vmatpush1.bf16.msra.mxu0 %v165
    %188 = vmatprep.subr.bf16.mxu0 0
    %189 = vmatpush1.bf16.msra.mxu0 %v166
    %190 = vmatprep.subr.bf16.mxu0 0
    %191 = vmatpush1.bf16.msra.mxu0 %v167
    %192 = vmatprep.subr.bf16.mxu0 0
    %193 = vmatpush1.bf16.msra.mxu0 0
    %194 = vmatprep.subr.bf16.mxu0 0
    %195 = vmatpush1.bf16.msra.mxu0 0
    %196 = vmatprep.subr.bf16.mxu0 0
    %197 = vmatpush1.bf16.msra.mxu0 0
    %198 = vmatprep.subr.bf16.mxu0 0
    %199 = vmatpush1.bf16.msra.mxu0 0
    %200 = vmatprep.subr.bf16.mxu0 0
    %201 = vmatpush1.bf16.msra.mxu0 0
    %202 = vmatprep.subr.bf16.mxu0 0
    %203 = vmatpush1.bf16.msra.mxu0 0
    %204 = vmatprep.subr.bf16.mxu0 0
    %205 = vmatpush1.bf16.msra.mxu0 0
    %206 = vmatprep.subr.bf16.mxu0 0
    %207 = vmatpush1.bf16.msra.mxu0 0
    %208 = vmatprep.mubr.bf16.mxu0 0
    %209 = vmatmul.mubr.bf16.gmra.mrb[0].mxu0 %v104
    %v210 = vpop.f32.mrb[0].mxu0
    %v211 = vadd.f32 %v126, %v210
    %v212 = vpop.f32.mrb[0].mxu0
    %v213 = vpop.f32.mrb[0].mxu0
    %v214 = vpop.f32.mrb[0].mxu0
    %215 = vdwg.mxu0
    %v216 = vtanh.pop %v211
    %v217 = vpack.c.bf16 %v216, %v216
    %v218 = vld [vmem:[%s5] sm:$0xf]
    %v219 = vld [vmem:[%s5 + $0x4] sm:$0xf]
    %v220 = vld [vmem:[%s5 + $0x8] sm:$0xf]
    %v221 = vld [vmem:[%s5 + $0xc] sm:$0xf]
    %v222 = vld [vmem:[%s5 + $0x10] sm:$0xf]
    %v223 = vld [vmem:[%s5 + $0x14] sm:$0xf]
    %v224 = vld [vmem:[%s5 + $0x18] sm:$0xf]
    %v225 = vld [vmem:[%s5 + $0x1c] sm:$0xf]
    %v226 = vld [vmem:[%s5 + $0x20] sm:$0xf]
    %v227 = vld [vmem:[%s5 + $0x24] sm:$0xf]
    %v228 = vld [vmem:[%s5 + $0x28] sm:$0xf]
    %v229 = vld [vmem:[%s5 + $0x2c] sm:$0xf]
    %v230 = vld [vmem:[%s5 + $0x30] sm:$0xf]
    %v231 = vld [vmem:[%s5 + $0x34] sm:$0xf]
    %v232 = vld [vmem:[%s5 + $0x38] sm:$0xf]
    %v233 = vld [vmem:[%s5 + $0x3c] sm:$0xf]
    %v234 = vld [vmem:[%s6] sm:$0x1]
    %v236 = vlaneseq
    %v237 = vshrl.u32 %v236, 7
    %v238 = vsub.s32 0, %v237
    %v239 = vrot.slane %v234, %v238
    %v257 = vunpack.c.l.b16 %v218
    %v258 = vunpack.c.l.b16 %v219
    %v259 = vunpack.c.l.b16 %v220
    %v260 = vunpack.c.l.b16 %v221
    %v261 = vunpack.c.l.b16 %v222
    %v262 = vunpack.c.l.b16 %v223
    %v263 = vunpack.c.l.b16 %v224
    %v264 = vunpack.c.l.b16 %v225
    %v265 = vunpack.c.l.b16 %v226
    %v266 = vunpack.c.l.b16 %v227
    %v267 = vunpack.c.l.b16 %v228
    %v268 = vunpack.c.l.b16 %v229
    %v269 = vunpack.c.l.b16 %v230
    %v270 = vunpack.c.l.b16 %v231
    %v271 = vunpack.c.l.b16 %v232
    %v272 = vunpack.c.l.b16 %v233
    %v273 = vpack.c.b16 %v258, %v257
    %v274 = vpack.c.b16 %v260, %v259
    %v275 = vpack.c.b16 %v262, %v261
    %v276 = vpack.c.b16 %v264, %v263
    %v277 = vpack.c.b16 %v266, %v265
    %v278 = vpack.c.b16 %v268, %v267
    %v279 = vpack.c.b16 %v270, %v269
    %v280 = vpack.c.b16 %v272, %v271
    %289 = vmatprep.subr.bf16.mxu0 0
    %290 = vmatpush1.bf16.msra.mxu0 %v273
    %291 = vmatprep.subr.bf16.mxu0 0
    %292 = vmatpush1.bf16.msra.mxu0 %v274
    %293 = vmatprep.subr.bf16.mxu0 0
    %294 = vmatpush1.bf16.msra.mxu0 %v275
    %295 = vmatprep.subr.bf16.mxu0 0
    %296 = vmatpush1.bf16.msra.mxu0 %v276
    %297 = vmatprep.subr.bf16.mxu0 0
    %298 = vmatpush1.bf16.msra.mxu0 %v277
    %299 = vmatprep.subr.bf16.mxu0 0
    %300 = vmatpush1.bf16.msra.mxu0 %v278
    %301 = vmatprep.subr.bf16.mxu0 0
    %302 = vmatpush1.bf16.msra.mxu0 %v279
    %303 = vmatprep.subr.bf16.mxu0 0
    %304 = vmatpush1.bf16.msra.mxu0 %v280
    %305 = vmatprep.subr.bf16.mxu0 0
    %306 = vmatpush1.bf16.msra.mxu0 0
    %307 = vmatprep.subr.bf16.mxu0 0
    %308 = vmatpush1.bf16.msra.mxu0 0
    %309 = vmatprep.subr.bf16.mxu0 0
    %310 = vmatpush1.bf16.msra.mxu0 0
    %311 = vmatprep.subr.bf16.mxu0 0
    %312 = vmatpush1.bf16.msra.mxu0 0
    %313 = vmatprep.subr.bf16.mxu0 0
    %314 = vmatpush1.bf16.msra.mxu0 0
    %315 = vmatprep.subr.bf16.mxu0 0
    %316 = vmatpush1.bf16.msra.mxu0 0
    %317 = vmatprep.subr.bf16.mxu0 0
    %318 = vmatpush1.bf16.msra.mxu0 0
    %319 = vmatprep.subr.bf16.mxu0 0
    %320 = vmatpush1.bf16.msra.mxu0 0
    %321 = vmatprep.mubr.bf16.mxu0 0
    %322 = vmatmul.mubr.bf16.gmra.mrb[0].mxu0 %v217
    %v323 = vpop.f32.mrb[0].mxu0
    %v324 = vadd.f32 %v239, %v323
    %v325 = vpop.f32.mrb[0].mxu0
    %v326 = vpop.f32.mrb[0].mxu0
    %v327 = vpop.f32.mrb[0].mxu0
    %328 = vdwg.mxu0
    %v329 = vtanh.pop %v324
    %v330 = vpack.c.bf16 %v329, %v329
    %v331 = vld [vmem:[%s7] sm:$0xf]
    %v332 = vld [vmem:[%s7 + $0x4] sm:$0xf]
    %v333 = vld [vmem:[%s7 + $0x8] sm:$0xf]
    %v334 = vld [vmem:[%s7 + $0xc] sm:$0xf]
    %v335 = vld [vmem:[%s7 + $0x10] sm:$0xf]
    %v336 = vld [vmem:[%s7 + $0x14] sm:$0xf]
    %v337 = vld [vmem:[%s7 + $0x18] sm:$0xf]
    %v338 = vld [vmem:[%s7 + $0x1c] sm:$0xf]
    %v339 = vld [vmem:[%s7 + $0x20] sm:$0xf]
    %v340 = vld [vmem:[%s7 + $0x24] sm:$0xf]
    %v341 = vld [vmem:[%s7 + $0x28] sm:$0xf]
    %v342 = vld [vmem:[%s7 + $0x2c] sm:$0xf]
    %v343 = vld [vmem:[%s7 + $0x30] sm:$0xf]
    %v344 = vld [vmem:[%s7 + $0x34] sm:$0xf]
    %v345 = vld [vmem:[%s7 + $0x38] sm:$0xf]
    %v346 = vld [vmem:[%s7 + $0x3c] sm:$0xf]
    %v347 = vld [vmem:[%s8] sm:$0x1]
    %v349 = vlaneseq
    %v350 = vshrl.u32 %v349, 7
    %v351 = vsub.s32 0, %v350
    %v352 = vrot.slane %v347, %v351
    %v370 = vunpack.c.l.b16 %v331
    %v371 = vunpack.c.l.b16 %v332
    %v372 = vunpack.c.l.b16 %v333
    %v373 = vunpack.c.l.b16 %v334
    %v374 = vunpack.c.l.b16 %v335
    %v375 = vunpack.c.l.b16 %v336
    %v376 = vunpack.c.l.b16 %v337
    %v377 = vunpack.c.l.b16 %v338
    %v378 = vunpack.c.l.b16 %v339
    %v379 = vunpack.c.l.b16 %v340
    %v380 = vunpack.c.l.b16 %v341
    %v381 = vunpack.c.l.b16 %v342
    %v382 = vunpack.c.l.b16 %v343
    %v383 = vunpack.c.l.b16 %v344
    %v384 = vunpack.c.l.b16 %v345
    %v385 = vunpack.c.l.b16 %v346
    %v386 = vpack.c.b16 %v371, %v370
    %v387 = vpack.c.b16 %v373, %v372
    %v388 = vpack.c.b16 %v375, %v374
    %v389 = vpack.c.b16 %v377, %v376
    %v390 = vpack.c.b16 %v379, %v378
    %v391 = vpack.c.b16 %v381, %v380
    %v392 = vpack.c.b16 %v383, %v382
    %v393 = vpack.c.b16 %v385, %v384
    %402 = vmatprep.subr.bf16.mxu0 0
    %403 = vmatpush1.bf16.msra.mxu0 %v386
    %404 = vmatprep.subr.bf16.mxu0 0
    %405 = vmatpush1.bf16.msra.mxu0 %v387
    %406 = vmatprep.subr.bf16.mxu0 0
    %407 = vmatpush1.bf16.msra.mxu0 %v388
    %408 = vmatprep.subr.bf16.mxu0 0
    %409 = vmatpush1.bf16.msra.mxu0 %v389
    %410 = vmatprep.subr.bf16.mxu0 0
    %411 = vmatpush1.bf16.msra.mxu0 %v390
    %412 = vmatprep.subr.bf16.mxu0 0
    %413 = vmatpush1.bf16.msra.mxu0 %v391
    %414 = vmatprep.subr.bf16.mxu0 0
    %415 = vmatpush1.bf16.msra.mxu0 %v392
    %416 = vmatprep.subr.bf16.mxu0 0
    %417 = vmatpush1.bf16.msra.mxu0 %v393
    %418 = vmatprep.subr.bf16.mxu0 0
    %419 = vmatpush1.bf16.msra.mxu0 0
    %420 = vmatprep.subr.bf16.mxu0 0
    %421 = vmatpush1.bf16.msra.mxu0 0
    %422 = vmatprep.subr.bf16.mxu0 0
    %423 = vmatpush1.bf16.msra.mxu0 0
    %424 = vmatprep.subr.bf16.mxu0 0
    %425 = vmatpush1.bf16.msra.mxu0 0
    %426 = vmatprep.subr.bf16.mxu0 0
    %427 = vmatpush1.bf16.msra.mxu0 0
    %428 = vmatprep.subr.bf16.mxu0 0
    %429 = vmatpush1.bf16.msra.mxu0 0
    %430 = vmatprep.subr.bf16.mxu0 0
    %431 = vmatpush1.bf16.msra.mxu0 0
    %432 = vmatprep.subr.bf16.mxu0 0
    %433 = vmatpush1.bf16.msra.mxu0 0
    %434 = vmatprep.mubr.bf16.mxu0 0
    %435 = vmatmul.mubr.bf16.gmra.mrb[0].mxu0 %v330
    %v436 = vpop.f32.mrb[0].mxu0
    %v437 = vadd.f32 %v352, %v436
    %v438 = vpop.f32.mrb[0].mxu0
    %v439 = vpop.f32.mrb[0].mxu0
    %v440 = vpop.f32.mrb[0].mxu0
    %441 = vdwg.mxu0
    %vm442 = vcmask 64512
    %443 = vst.msk [vmem:[#allocation2] sm:$0xff] %vm442, %v437
    // Predicated region
    $region38: #{_neural_net_forward.1} parent=1 // pred_check
      _
    $region39: #{_neural_net_forward.1} parent=1 // pred_check_branch
      %445 = sbr.rel (0) target = $region41
    $region40: #{_neural_net_forward.1} parent=1 // pred_region
      %s447 = ssub.s32 128, 128
      %448 = vsyncadd [#allocation3], %s447
      %s450 = sshll.u32 [#allocation2], 4
      %s451 = int_to_ptr.vmem [resolvable:$true] %s450
      %453 = dma.vmem_to_hbm [thread:$0]  %s451, 128, %s9, [#allocation3]
    $region41: #{_neural_net_forward.1} parent=1 // pred_fallthru
      _
    // Predicated region
    $region42: #{_neural_net_forward.1} parent=1 // pred_check
      _
    $region43: #{_neural_net_forward.1} parent=1 // pred_check_branch
      %455 = sbr.rel (0) target = $region45
    $region44: #{_neural_net_forward.1} parent=1 // pred_region
      %456 = dma.done [#allocation3], 128
    $region45: #{_neural_net_forward.1} parent=1 // pred_fallthru
      _
    %457 = vsyncpa [#allocation3], 1

</llo_original>
